<compile_context>
chip_gen: v6e
topology: v6e:2x2x1
jax: 0.10.0
libtpu: 0.0.40
codegen_flags: <defaults>
</compile_context>

<pallas_src>
import functools

import jax
import jax.numpy as jnp
import numpy as np
from jax import lax
from jax.experimental import pallas as pl
from jax.experimental.pallas import tpu as pltpu

SCALE = 1.0
LOGSCALE_FACTOR = 3.0

_LANE = 128
_MIN_SUBLANE = 8


def _cdiv(a, b):
    return -(-a // b)


def _round_up(a, m):
    return _cdiv(a, m) * m


def _sublane_multiple(itemsize):
    # f32 -> 8 rows, bf16 -> 16, int8/fp8 -> 32 (sub-32-bit packs along sublanes).
    return max(_MIN_SUBLANE, 32 // max(1, int(itemsize)))


def _vmem_budget():
    """(per-block byte budget, vmem_limit_bytes), chip-aware.

    v7x has 64 MiB physical VMEM per TensorCore (vs 128 MiB on v5e/v6e), so
    keep 2*(in+out) double-buffers <= ~24 MiB there; v5e/v6e get bigger blocks.
    """
    phys = None
    try:
        info = pltpu.get_tpu_info()
        phys = getattr(info, "vmem_capacity_bytes", None)
    except Exception:
        phys = None
    if phys is None or phys <= 64 * 1024 * 1024:          # v7x or unknown: conservative
        return 6 * 1024 * 1024, 32 * 1024 * 1024
    return 8 * 1024 * 1024, 48 * 1024 * 1024              # v5e / v6e


def _choose_tiles(r, s, itemsize, per_block_bytes):
    """Tile sizes for a row-major (r, s) array.

    tile_s is a multiple of 128 (lane-dense stores), tile_r a multiple of the
    dtype-aware sublane packing, block bytes <= per_block_bytes, and the grid
    is kept >= 2 steps whenever possible (v7x has two TensorCores).  Blocks
    need not divide the array: edge blocks are masked by the pipeline.
    """
    sub = _sublane_multiple(itemsize)
    max_elems = max(sub * _LANE, per_block_bytes // itemsize)

    # Lane (last-dim) tile first: as wide as possible while leaving >= sub rows.
    tile_s_cap = max(_LANE, (max_elems // sub) // _LANE * _LANE)
    tile_s = min(tile_s_cap, _round_up(s, _LANE))
    s_blocks = _cdiv(s, tile_s)
    tile_s = min(_round_up(_cdiv(s, s_blocks), _LANE), tile_s_cap)
    s_blocks = _cdiv(s, tile_s)

    # Row (sublane) tile with the remaining budget.
    tile_r_cap = max(sub, (max_elems // tile_s) // sub * sub)
    tile_r = min(tile_r_cap, _round_up(r, sub))
    r_blocks = _cdiv(r, tile_r)
    tile_r = min(_round_up(_cdiv(r, r_blocks), sub), tile_r_cap)
    r_blocks = _cdiv(r, tile_r)

    # Don't let medium inputs collapse to grid == 1 (would idle one v7x core).
    if r_blocks * s_blocks == 1:
        if s >= 2 * _LANE:
            tile_s = _round_up(_cdiv(s, 2), _LANE)
            s_blocks = _cdiv(s, tile_s)
        elif r >= 2 * sub:
            tile_r = _round_up(_cdiv(r, 2), sub)
            r_blocks = _cdiv(r, tile_r)
    return tile_r, r_blocks, tile_s, s_blocks


# ---------------------------------------------------------------------------
# Kernels
# ---------------------------------------------------------------------------
def _scale_shift_kernel(x_ref, p_ref, z_ref):
    """z = (x + bias) * scale on one (TILE_R, TILE_S) block.

    p_ref packs the per-row parameters as f32 columns: [:, 0] = bias,
    [:, 1] = scale.  Math promotes to f32; the store casts to the out dtype.
    """
    p = p_ref[...]                       # (TILE_R, 2) f32
    bias = p[:, 0:1]
    scale = p[:, 1:2]
    z_ref[...] = ((x_ref[...] + bias) * scale).astype(z_ref.dtype)


# ---------------------------------------------------------------------------
# Forward (already-initialized parameters)
# ---------------------------------------------------------------------------
def _actnorm_forward_impl(x, bias, logs, logdet, logscale_factor):
    n, c, s = x.shape
    r = n * c
    itemsize = jnp.dtype(x.dtype).itemsize

    bias_c = jnp.asarray(bias, jnp.float32).reshape(c)
    logs_eff = jnp.asarray(logs, jnp.float32).reshape(c) * logscale_factor
    scale_c = jnp.exp(logs_eff)                          # O(C), hoisted out of the kernel

    # Native layout: free contiguous reshape; row i of x2 <-> channel i % C.
    x2 = x.reshape(r, s)
    params = jnp.tile(jnp.stack([bias_c, scale_c], axis=-1), (n, 1))   # (r, 2) f32

    per_block, vmem_limit = _vmem_budget()
    tile_r, r_blocks, tile_s, s_blocks = _choose_tiles(r, s, itemsize, per_block)

    z2 = pl.pallas_call(
        _scale_shift_kernel,
        out_shape=jax.ShapeDtypeStruct((r, s), x.dtype),
        grid=(r_blocks, s_blocks),
        in_specs=[pl.BlockSpec((tile_r, tile_s), lambda i, j: (i, j)),
                  pl.BlockSpec((tile_r, 2), lambda i, j: (i, 0))],
        out_specs=pl.BlockSpec((tile_r, tile_s), lambda i, j: (i, j)),
        compiler_params=pltpu.CompilerParams(
            dimension_semantics=("parallel", "parallel"),   # v7x: both TensorCores
            vmem_limit_bytes=vmem_limit),
        cost_estimate=pl.CostEstimate(
            flops=2 * r * s,
            transcendentals=0,
            bytes_accessed=2 * r * s * itemsize + r * 2 * 4),
    )(x2, params)

    z = z2.reshape(n, c, s)
    if logdet is None:
        return z, None
    # PyTorch module: logdet_factor = 1, dlogdet = sum(logs * logscale_factor).
    return z, jnp.asarray(logdet, jnp.float32) + jnp.sum(logs_eff)


# ---------------------------------------------------------------------------
# Data-dependent initialization (first forward call)
# ---------------------------------------------------------------------------
def _channel_moments(x, per_block, vmem_limit):
    """Per-channel mean(x) and mean(x**2) over dims (0, 2), streaming x once."""
    n, c, s = x.shape
    r = n * c
    itemsize = jnp.dtype(x.dtype).itemsize
    x2 = x.reshape(r, s)

    tile_r, r_blocks, tile_s, s_blocks = _choose_tiles(r, s, itemsize, per_block)
    r_p = r_blocks * tile_r

    # Split the S reduction across a leading "parallel" axis so both v7x
    # TensorCores stream HBM; it is simply sequential on single-core v5e/v6e.
    num_splits = 2 if s_blocks >= 2 else 1
    s_pp = _cdiv(s_blocks, num_splits)          # S blocks handled per split
    last_blk = s_blocks - 1                     # clamp target for redundant steps

    def stats_kernel(x_ref, sum_ref, sumsq_ref):
        @pl.when(pl.program_id(2) == 0)
        def _init():
            sum_ref[...] = jnp.zeros_like(sum_ref)
            sumsq_ref[...] = jnp.zeros_like(sumsq_ref)

        # Mask out-of-range lanes (edge block + clamped duplicate blocks); the
        # mask uses the *logical* block position, so clamped steps add zero.
        blk = pl.program_id(0) * s_pp + pl.program_id(2)
        col = blk * tile_s + lax.broadcasted_iota(jnp.int32, (1, tile_s), 1)
        xf = jnp.where(col < s, x_ref[...].astype(jnp.float32), 0.0)
        sum_ref[...] += jnp.sum(xf, axis=1, keepdims=True)
        sumsq_ref[...] += jnp.sum(xf * xf, axis=1, keepdims=True)

    sums, sumsqs = pl.pallas_call(
        stats_kernel,
        out_shape=(jax.ShapeDtypeStruct((num_splits * r_p, 1), jnp.float32),
                   jax.ShapeDtypeStruct((num_splits * r_p, 1), jnp.float32)),
        grid=(num_splits, r_blocks, s_pp),
        in_specs=[pl.BlockSpec(
            (tile_r, tile_s),
            lambda p, i, j: (i, jnp.minimum(p * s_pp + j, last_blk)))],
        out_specs=(pl.BlockSpec((tile_r, 1), lambda p, i, j: (p * r_blocks + i, 0)),
                   pl.BlockSpec((tile_r, 1), lambda p, i, j: (p * r_blocks + i, 0))),
        compiler_params=pltpu.CompilerParams(
            dimension_semantics=("parallel", "parallel", "arbitrary"),
            vmem_limit_bytes=vmem_limit),
        cost_estimate=pl.CostEstimate(
            flops=3 * r * s,
            transcendentals=0,
            bytes_accessed=r * s * itemsize),
    )(x2)

    # Combine: drop garbage rows (row padding), sum the parallel partials,
    # then reduce the batch dimension (row i <-> channel i % C).
    count = float(n * s)
    row_sum = sums.reshape(num_splits, r_p)[:, :r].sum(axis=0)
    row_sumsq = sumsqs.reshape(num_splits, r_p)[:, :r].sum(axis=0)
    mean = row_sum.reshape(n, c).sum(axis=0) / count
    meansq = row_sumsq.reshape(n, c).sum(axis=0) / count
    return mean, meansq


def _actnorm_first_call_impl(x, logdet, scale, logscale_factor, batch_variance):
    n, c, s = x.shape
    per_block, vmem_limit = _vmem_budget()
    mean, meansq = _channel_moments(x, per_block, vmem_limit)
    if batch_variance:
        meansq = jnp.full((c,), jnp.mean(meansq), jnp.float32)
    bias = -mean
    # Matches the PyTorch module: initialize_logs uses the *uncentered* second
    # moment mean(x**2), not the centered variance.
    logs = jnp.log(scale / (jnp.sqrt(meansq) + 1e-6)) / logscale_factor
    z, logdet_out = _actnorm_forward_impl(x, bias, logs, logdet, logscale_factor)
    return z, logdet_out, bias.reshape(1, c, 1), logs.reshape(1, c, 1)


_forward_jit = jax.jit(_actnorm_forward_impl)
_first_call_jit = jax.jit(_actnorm_first_call_impl,
                          static_argnames=("batch_variance",))


def actnorm_forward(x, bias, logs, logdet=0.0, logscale_factor=LOGSCALE_FACTOR):
    """ActNorm.forward with given bias/logs (any shape holding C values).

    Returns (z, logdet_out); logdet_out is None when logdet is None, mirroring
    the PyTorch module.
    """
    return _forward_jit(x, bias, logs, logdet, logscale_factor)


def actnorm_forward_first_call(x, logdet=0.0, scale=SCALE,
                               logscale_factor=LOGSCALE_FACTOR,
                               batch_variance=False):
    """ActNorm.forward on an un-initialized module (data-dependent init).

    Returns (z, logdet_out, bias, logs) with bias/logs shaped (1, C, 1),
    matching the PyTorch parameter shapes.
    """
    return _first_call_jit(x, logdet, scale, logscale_factor,
                           batch_variance=batch_variance)


# ---------------------------------------------------------------------------
# Self-test
# ---------------------------------------------------------------------------
if __name__ == "__main__":
    def _reference(x, logdet0):
        xm = jnp.mean(x, axis=(0, 2), keepdims=True)
        xv = jnp.mean(x * x, axis=(0, 2), keepdims=True)
        bias_r = -xm
        logs_r = jnp.log(SCALE / (jnp.sqrt(xv) + 1e-6)) / LOGSCALE_FACTOR
        z_r = (x + bias_r) * jnp.exp(logs_r * LOGSCALE_FACTOR)
        logdet_r = logdet0 + jnp.sum(logs_r * LOGSCALE_FACTOR)
        return z_r, logdet_r, bias_r, logs_r

    key = jax.random.PRNGKey(0)

    # --- small shape in the module's N_B x N_C x N_S convention --------------
    N, C, S = 2, 4, 16
    x = jax.random.normal(key, (N, C, S), jnp.float32) * 0.7 + 0.3

    z, logdet, bias, logs = actnorm_forward_first_call(x, 0.0)
    jax.block_until_ready((z, logdet, bias, logs))
    z_r, logdet_r, bias_r, logs_r = _reference(x, 0.0)
    assert np.allclose(np.asarray(z), np.asarray(z_r), atol=1e-5, rtol=1e-5)
    assert np.allclose(np.asarray(bias), np.asarray(bias_r), atol=1e-5, rtol=1e-5)
    assert np.allclose(np.asarray(logs), np.asarray(logs_r), atol=1e-5, rtol=1e-5)
    assert np.allclose(float(logdet), float(logdet_r), atol=1e-5, rtol=1e-5)

    # steady-state path with the module's __init__ params (zeros) => identity
    bias0 = jnp.zeros((1, C, 1), jnp.float32)
    logs0 = jnp.zeros((1, C, 1), jnp.float32)
    z2, logdet2 = actnorm_forward(x, bias0, logs0, 0.0)
    jax.block_until_ready((z2, logdet2))
    assert np.allclose(np.asarray(z2), np.asarray(x), atol=1e-5, rtol=1e-5)
    assert np.allclose(float(logdet2), 0.0, atol=1e-6)

    # logdet=None passthrough (module semantics)
    z_none, ld_none = actnorm_forward(x, bias0, logs0, logdet=None)
    jax.block_until_ready(z_none)
    assert ld_none is None

    # --- larger odd shape: exercises edge-block masking (S not a multiple of
    #     128, N*C not a multiple of 8), a multi-step parallel grid and the
    #     2-way split accumulating init reduction -----------------------------
    N2, C2, S2 = 2, 6, 22000
    x2 = jax.random.normal(jax.random.PRNGKey(1), (N2, C2, S2), jnp.float32) * 1.3 - 0.2
    z3, logdet3, bias3, logs3 = actnorm_forward_first_call(x2, 0.0)
    jax.block_until_ready((z3, logdet3))
    z3_r, logdet3_r, bias3_r, logs3_r = _reference(x2, 0.0)
    # looser tolerance: f32 accumulation order differs from the jnp.mean reference
    assert np.allclose(np.asarray(bias3), np.asarray(bias3_r), atol=1e-3, rtol=1e-3)
    assert np.allclose(np.asarray(logs3), np.asarray(logs3_r), atol=1e-3, rtol=1e-3)
    assert np.allclose(np.asarray(z3), np.asarray(z3_r), atol=1e-3, rtol=1e-3)
    assert np.allclose(float(logdet3), float(logdet3_r), atol=1e-3, rtol=1e-3)

    # --- bf16 steady-state path (dtype-aware 16-row sublane tiling) ----------
    xb = (jax.random.normal(jax.random.PRNGKey(2), (4, 8, 384)) * 0.5).astype(jnp.bfloat16)
    biasb = jnp.linspace(-0.5, 0.5, 8).reshape(1, 8, 1).astype(jnp.float32)
    logsb = jnp.linspace(-0.1, 0.1, 8).reshape(1, 8, 1).astype(jnp.float32)
    zb, logdetb = actnorm_forward(xb, biasb, logsb, 0.0)
    jax.block_until_ready((zb, logdetb))
    zb_ref = (xb.astype(jnp.float32) + biasb) * jnp.exp(logsb * LOGSCALE_FACTOR)
    assert np.allclose(np.asarray(zb, dtype=np.float32), np.asarray(zb_ref),
                       atol=5e-2, rtol=5e-2)

    print("KERNEL_OK")
</pallas_src>

<mosaic_0001>
module attributes {stable_mosaic.version = 11 : i64} {
  func.func @stats_kernel(%arg0: i32, %arg1: i32, %arg2: i32, %arg3: memref<8x128xf32, #tpu.memory_space<vmem>>, %arg4: memref<8x1xf32, #tpu.memory_space<vmem>>, %arg5: memref<8x1xf32, #tpu.memory_space<vmem>>) attributes {dimension_semantics = [#tpu.dimension_semantics<parallel>, #tpu.dimension_semantics<parallel>, #tpu.dimension_semantics<arbitrary>], iteration_bounds = array<i64: 1, 1, 1>, scalar_prefetch = 0 : i64, scratch_operands = 0 : i64, tpu.core_type = #tpu.core_type<tc>, window_params = [{transform_indices = @transform_0, window_bounds = array<i64: 8, 128>}, {transform_indices = @transform_1, window_bounds = array<i64: 8, 1>}, {transform_indices = @transform_2, window_bounds = array<i64: 8, 1>}]} {
    %c0_i32 = arith.constant 0 : i32
    %0 = arith.cmpi eq, %arg2, %c0_i32 : i32
    %1 = arith.extui %0 : i1 to i32
    %c0_i32_0 = arith.constant 0 : i32
    %2 = arith.cmpi ne, %1, %c0_i32_0 : i32
    scf.if %2 {
      %cst_12 = arith.constant 0.000000e+00 : f32
      %27 = vector.broadcast %cst_12 : f32 to vector<8x1xf32>
      %c0_13 = arith.constant 0 : index
      %c0_14 = arith.constant 0 : index
      %28 = vector.load %arg4[%c0_13, %c0_14] : memref<8x1xf32, #tpu.memory_space<vmem>>, vector<8x1xf32>
      tpu.vector_store %arg4[%c0_13, %c0_14], %27 {strides = array<i32>} : memref<8x1xf32, #tpu.memory_space<vmem>>, vector<8x1xf32>,
      %cst_15 = arith.constant 0.000000e+00 : f32
      %29 = vector.broadcast %cst_15 : f32 to vector<8x1xf32>
      %c0_16 = arith.constant 0 : index
      %c0_17 = arith.constant 0 : index
      %30 = vector.load %arg5[%c0_16, %c0_17] : memref<8x1xf32, #tpu.memory_space<vmem>>, vector<8x1xf32>
      tpu.vector_store %arg5[%c0_16, %c0_17], %29 {strides = array<i32>} : memref<8x1xf32, #tpu.memory_space<vmem>>, vector<8x1xf32>,
    } else {
    }
    %c1_i32 = arith.constant 1 : i32
    %3 = arith.muli %arg0, %c1_i32 : i32
    %4 = arith.addi %3, %arg2 : i32
    %c128_i32 = arith.constant 128 : i32
    %5 = arith.muli %4, %c128_i32 : i32
    %6 = tpu.iota {dimensions = array<i32: 1>} : vector<1x128xi32>
    %7 = vector.broadcast %5 : i32 to vector<1x128xi32>
    %8 = arith.addi %7, %6 : vector<1x128xi32>
    %c16_i32 = arith.constant 16 : i32
    %9 = vector.broadcast %c16_i32 : i32 to vector<1x128xi32>
    %10 = arith.cmpi slt, %8, %9 : vector<1x128xi32>
    %c0 = arith.constant 0 : index
    %c0_1 = arith.constant 0 : index
    %11 = vector.load %arg3[%c0, %c0_1] : memref<8x128xf32, #tpu.memory_space<vmem>>, vector<8x128xf32>
    %cst = arith.constant 0.000000e+00 : f32
    %12 = vector.shape_cast %10 : vector<1x128xi1> to vector<1x128xi1>
    %13 = vector.broadcast %12 : vector<1x128xi1> to vector<8x128xi1>
    %14 = vector.broadcast %cst : f32 to vector<8x128xf32>
    %15 = arith.select %13, %11, %14 : vector<8x128xi1>, vector<8x128xf32>
    %c0_2 = arith.constant 0 : index
    %c0_3 = arith.constant 0 : index
    %16 = vector.load %arg4[%c0_2, %c0_3] : memref<8x1xf32, #tpu.memory_space<vmem>>, vector<8x1xf32>
    %cst_4 = arith.constant dense<0.000000e+00> : vector<8xf32>
    %17 = vector.multi_reduction <add>, %15, %cst_4 [1] : vector<8x128xf32> to vector<8xf32>
    %18 = vector.shape_cast %17 : vector<8xf32> to vector<8x1xf32>
    %19 = arith.addf %16, %18 : vector<8x1xf32>
    %c0_5 = arith.constant 0 : index
    %c0_6 = arith.constant 0 : index
    %20 = vector.load %arg4[%c0_5, %c0_6] : memref<8x1xf32, #tpu.memory_space<vmem>>, vector<8x1xf32>
    tpu.vector_store %arg4[%c0_5, %c0_6], %19 {strides = array<i32>} : memref<8x1xf32, #tpu.memory_space<vmem>>, vector<8x1xf32>,
    %c0_7 = arith.constant 0 : index
    %c0_8 = arith.constant 0 : index
    %21 = vector.load %arg5[%c0_7, %c0_8] : memref<8x1xf32, #tpu.memory_space<vmem>>, vector<8x1xf32>
    %22 = arith.mulf %15, %15 : vector<8x128xf32>
    %cst_9 = arith.constant dense<0.000000e+00> : vector<8xf32>
    %23 = vector.multi_reduction <add>, %22, %cst_9 [1] : vector<8x128xf32> to vector<8xf32>
    %24 = vector.shape_cast %23 : vector<8xf32> to vector<8x1xf32>
    %25 = arith.addf %21, %24 : vector<8x1xf32>
    %c0_10 = arith.constant 0 : index
    %c0_11 = arith.constant 0 : index
    %26 = vector.load %arg5[%c0_10, %c0_11] : memref<8x1xf32, #tpu.memory_space<vmem>>, vector<8x1xf32>
    tpu.vector_store %arg5[%c0_10, %c0_11], %25 {strides = array<i32>} : memref<8x1xf32, #tpu.memory_space<vmem>>, vector<8x1xf32>,
    return
  }
  func.func @transform_0(%arg0: i32, %arg1: i32, %arg2: i32) -> (i32, i32) {
    %c1_i32 = arith.constant 1 : i32
    %0 = arith.muli %arg0, %c1_i32 : i32
    %1 = arith.addi %0, %arg2 : i32
    %c0_i32 = arith.constant 0 : i32
    %2 = arith.minsi %1, %c0_i32 : i32
    %c0_i32_0 = arith.constant 0 : i32
    return %arg1, %2 : i32, i32
  }
  func.func @transform_1(%arg0: i32, %arg1: i32, %arg2: i32) -> (i32, i32) {
    %c1_i32 = arith.constant 1 : i32
    %0 = arith.muli %arg0, %c1_i32 : i32
    %1 = arith.addi %0, %arg1 : i32
    %c0_i32 = arith.constant 0 : i32
    %c0_i32_0 = arith.constant 0 : i32
    return %1, %c0_i32 : i32, i32
  }
  func.func @transform_2(%arg0: i32, %arg1: i32, %arg2: i32) -> (i32, i32) {
    %c1_i32 = arith.constant 1 : i32
    %0 = arith.muli %arg0, %c1_i32 : i32
    %1 = arith.addi %0, %arg1 : i32
    %c0_i32 = arith.constant 0 : i32
    %c0_i32_0 = arith.constant 0 : i32
    return %1, %c0_i32 : i32, i32
  }
}

module attributes {stable_mosaic.version = 11 : i64} {
  func.func @_scale_shift_kernel(%arg0: i32, %arg1: i32, %arg2: memref<8x128xf32, #tpu.memory_space<vmem>>, %arg3: memref<8x2xf32, #tpu.memory_space<vmem>>, %arg4: memref<8x128xf32, #tpu.memory_space<vmem>>) attributes {dimension_semantics = [#tpu.dimension_semantics<parallel>, #tpu.dimension_semantics<parallel>], iteration_bounds = array<i64: 1, 1>, scalar_prefetch = 0 : i64, scratch_operands = 0 : i64, tpu.core_type = #tpu.core_type<tc>, window_params = [{transform_indices = @transform_0, window_bounds = array<i64: 8, 128>}, {transform_indices = @transform_1, window_bounds = array<i64: 8, 2>}, {transform_indices = @transform_2, window_bounds = array<i64: 8, 128>}]} {
    %c0 = arith.constant 0 : index
    %c0_0 = arith.constant 0 : index
    %0 = vector.load %arg3[%c0, %c0_0] : memref<8x2xf32, #tpu.memory_space<vmem>>, vector<8x2xf32>
    %1 = vector.extract_strided_slice %0 {offsets = [0, 0], sizes = [8, 1], strides = [1, 1]} : vector<8x2xf32> to vector<8x1xf32>
    %2 = vector.extract_strided_slice %0 {offsets = [0, 1], sizes = [8, 1], strides = [1, 1]} : vector<8x2xf32> to vector<8x1xf32>
    %c0_1 = arith.constant 0 : index
    %c0_2 = arith.constant 0 : index
    %3 = vector.load %arg2[%c0_1, %c0_2] : memref<8x128xf32, #tpu.memory_space<vmem>>, vector<8x128xf32>
    %4 = vector.broadcast %1 : vector<8x1xf32> to vector<8x128xf32>
    %5 = arith.addf %3, %4 : vector<8x128xf32>
    %6 = vector.broadcast %2 : vector<8x1xf32> to vector<8x128xf32>
    %7 = arith.mulf %5, %6 : vector<8x128xf32>
    %c0_3 = arith.constant 0 : index
    %c0_4 = arith.constant 0 : index
    %8 = vector.load %arg4[%c0_3, %c0_4] : memref<8x128xf32, #tpu.memory_space<vmem>>, vector<8x128xf32>
    tpu.vector_store %arg4[%c0_3, %c0_4], %7 {strides = array<i32>} : memref<8x128xf32, #tpu.memory_space<vmem>>, vector<8x128xf32>,
    return
  }
  func.func @transform_0(%arg0: i32, %arg1: i32) -> (i32, i32) {
    %c0_i32 = arith.constant 0 : i32
    return %arg0, %arg1 : i32, i32
  }
  func.func @transform_1(%arg0: i32, %arg1: i32) -> (i32, i32) {
    %c0_i32 = arith.constant 0 : i32
    %c0_i32_0 = arith.constant 0 : i32
    return %arg0, %c0_i32 : i32, i32
  }
  func.func @transform_2(%arg0: i32, %arg1: i32) -> (i32, i32) {
    %c0_i32 = arith.constant 0 : i32
    return %arg0, %arg1 : i32, i32
  }
}

</mosaic_0001>

<llo_original>
// kernel: _actnorm_first_call_impl.2
$region0: #{_actnorm_first_call_impl.2}
  #allocation0 [shape = 'u32[]', space=smem, size = 0x4, offset = 0x4, fixed_abs, tag = 'smem constant byte address 0x4 - core index']
  #allocation1 [shape = 'u32[144,128]{1,0:T(1,128)}', space=vmem, size = 0x12000, scoped, tag = 'internal scratch']
  %s0 = inlined_call_operand.hbm [shape: f32[8,16], index: 0, kind: input, shape index: {}]
  %s1 = inlined_call_operand.vmem [shape: f32[8,1], index: 1, kind: output, shape index: {0}]
  %s2 = inlined_call_operand.vmem [shape: f32[8,1], index: 2, kind: output, shape index: {1}]
  %3 = xla_tuple %s1, %s2
  %s4 = sld [smem:[#allocation0]]
  $region30: #{_actnorm_first_call_impl.2} parent=0
    _
  %s6 = ssub.s32 1, %s4
  %s7 = scalar_select 0, %s6, %s4
  $region1: #{_actnorm_first_call_impl.2} parent=0
    #allocation2 [shape = 'u8[4096]{0}', space=vmem, size = 0x1000, scoped, tag = 'input window, operand 0, single buffered']
    #allocation3 [shape = 's32[1]{0}', space=sflag, size = 0x4, scoped, tag = 'scoped memory for _actnorm_first_call_impl.2']
    %8 = vsyncpa [#allocation3], 0
    // Predicated region
    $region2: #{_actnorm_first_call_impl.2} parent=1 // pred_check
      _
    $region3: #{_actnorm_first_call_impl.2} parent=1 // pred_check_branch
      %10 = sbr.rel (0) target = $region5
    $region4: #{_actnorm_first_call_impl.2} parent=1 // pred_region
      %s11 = sadd.s32 0, 0
      %p12 = scmp.lt.s32.totalorder %s11, 0
      %s13 = scalar_select %p12, %s11, 0
      %s15 = ssub.s32 128, 128
      %16 = vsyncadd [#allocation3], %s15
      %s17 = smul.addr %s13, 128
      %s18 = scalar_lea.hbm %s0, %s17
      %s20 = sshll.u32 [#allocation2], 4
      %s21 = int_to_ptr.vmem [resolvable:$true] %s20
      %23 = dma.hbm_to_vmem [thread:$0]  %s18, 128, %s21, [#allocation3]
    $region5: #{_actnorm_first_call_impl.2} parent=1 // pred_fallthru
      _
    // Predicated region
    $region6: #{_actnorm_first_call_impl.2} parent=1 // pred_check
      _
    $region7: #{_actnorm_first_call_impl.2} parent=1 // pred_check_branch
      %25 = sbr.rel (0) target = $region9
    $region8: #{_actnorm_first_call_impl.2} parent=1 // pred_region
      %26 = dma.done [#allocation3], 128
    $region9: #{_actnorm_first_call_impl.2} parent=1 // pred_fallthru
      _
    %s27 = sadd.s32 0, 0
    %p28 = scmp.lt.s32.totalorder %s27, 0
    %s29 = scalar_select %p28, %s27, 0
    %s30 = smul.addr %s29, 8
    %s31 = scalar_lea.vmem %s1, %s30
    %s32 = sadd.s32 0, 0
    %p33 = scmp.lt.s32.totalorder %s32, 0
    %s34 = scalar_select %p33, %s32, 0
    %s35 = smul.addr %s34, 8
    %s36 = scalar_lea.vmem %s2, %s35
    %s37 = sadd.s32 0, 0
    %p38 = scmp.lt.s32.totalorder %s37, 0
    %s39 = scalar_select %p38, %s37, 0
    %s40 = sadd.s32 0, 0
    %p41 = scmp.lt.s32.totalorder %s40, 0
    %s42 = scalar_select %p41, %s40, 0
    %s43 = smul.addr %s42, 8
    %s44 = scalar_lea.vmem %s1, %s43
    %s45 = sadd.s32 0, 0
    %s46 = sadd.s32 0, 0
    %p47 = scmp.lt.s32.totalorder %s46, 0
    %s48 = scalar_select %p47, %s46, 0
    %s49 = smul.addr %s48, 8
    %s50 = scalar_lea.vmem %s2, %s49
    %s51 = sadd.s32 0, 0
    %p52 = scmp.eq.s32.totalorder 0, 0
    // Predicated region
    $region10: #{_actnorm_first_call_impl.2} parent=1 // pred_check
      %p53 = pneg %p52
    $region11: #{_actnorm_first_call_impl.2} parent=1 // pred_check_branch
      %55 = sbr.rel (%p53) target = $region13
    $region12: #{_actnorm_first_call_impl.2} parent=1 // pred_region
      %vm56 = vcmask 7168
      %57 = vst.msk [vmem:[%s44] sm:$0xff] %vm56, 0.0
      %58 = vst.msk [vmem:[%s50] sm:$0xff] %vm56, 0.0
    $region13: #{_actnorm_first_call_impl.2} parent=1 // pred_fallthru
      _
    %s59 = sadd.s32 0, 0
    %s60 = smul.u32 %s59, 128
    %v61 = vlaneseq
    %v62 = vand.u32 %v61, 127
    %v63 = vstv %s60
    %v64 = vadd.s32 %v63, %v62
    %vm65 = vcmp.lt.s32.totalorder %v64, 16
    %v66 = vld [vmem:[#allocation2] sm:$0xff]
    %v67 = vsel %vm65, 1, 0
    %vm68 = vcmp.eq.s32.totalorder %v67, 1
    %v69 = vsel %vm68, %v66, 0.0
    %v70 = vld [vmem:[%s44] sm:$0xff]
    %71 = vadd.xlane.f32.xlu0 %v69
    %v72 = vpop.xlane.xlu0 %71
    %v73 = vadd.f32 %v70, %v72
    %vm74 = vcmask 7168
    %75 = vst.msk [vmem:[%s44] sm:$0xff] %vm74, %v73
    %v76 = vld [vmem:[%s50] sm:$0xff]
    %v77 = vmul.f32 %v69, %v69
    %78 = vadd.xlane.f32.xlu0 %v77
    %v79 = vpop.xlane.xlu0 %78
    %v80 = vadd.f32 %v76, %v79
    %81 = vst.msk [vmem:[%s50] sm:$0xff] %vm74, %v80
    %s82 = sadd.s32 0, 0
    %p83 = scmp.lt.s32.totalorder %s82, 0
    %s84 = scalar_select %p83, %s82, 0
    %s85 = smul.addr %s84, 8
    %s86 = scalar_lea.vmem %s1, %s85
    %s87 = sadd.s32 0, 0
    %p88 = scmp.lt.s32.totalorder %s87, 0
    %s89 = scalar_select %p88, %s87, 0
    %s90 = smul.addr %s89, 8
    %s91 = scalar_lea.vmem %s2, %s90
    // Predicated region
    $region14: #{_actnorm_first_call_impl.2} parent=1 // pred_check
      _
    $region15: #{_actnorm_first_call_impl.2} parent=1 // pred_check_branch
      %93 = sbr.rel (0) target = $region17
    $region16: #{_actnorm_first_call_impl.2} parent=1 // pred_region
      %s94 = sadd.s32 0, 0
    $region17: #{_actnorm_first_call_impl.2} parent=1 // pred_fallthru
      _
    // Predicated region
    $region18: #{_actnorm_first_call_impl.2} parent=1 // pred_check
      _
    $region19: #{_actnorm_first_call_impl.2} parent=1 // pred_check_branch
      %96 = sbr.rel (0) target = $region21
    $region20: #{_actnorm_first_call_impl.2} parent=1 // pred_region
      %s97 = sadd.s32 0, 0
    $region21: #{_actnorm_first_call_impl.2} parent=1 // pred_fallthru
      _
    // Predicated region
    $region22: #{_actnorm_first_call_impl.2} parent=1 // pred_check
      _
    $region23: #{_actnorm_first_call_impl.2} parent=1 // pred_check_branch
      %99 = sbr.rel (0) target = $region25
    $region24: #{_actnorm_first_call_impl.2} parent=1 // pred_region
      %s100 = sadd.s32 0, 0
      %p101 = scmp.lt.s32.totalorder %s100, 0
      %s102 = scalar_select %p101, %s100, 0
      %s103 = smul.addr %s102, 8
      %s104 = scalar_lea.vmem %s1, %s103
    $region25: #{_actnorm_first_call_impl.2} parent=1 // pred_fallthru
      _
    // Predicated region
    $region26: #{_actnorm_first_call_impl.2} parent=1 // pred_check
      _
    $region27: #{_actnorm_first_call_impl.2} parent=1 // pred_check_branch
      %106 = sbr.rel (0) target = $region29
    $region28: #{_actnorm_first_call_impl.2} parent=1 // pred_region
      %s107 = sadd.s32 0, 0
      %p108 = scmp.lt.s32.totalorder %s107, 0
      %s109 = scalar_select %p108, %s107, 0
      %s110 = smul.addr %s109, 8
      %s111 = scalar_lea.vmem %s2, %s110
    $region29: #{_actnorm_first_call_impl.2} parent=1 // pred_fallthru
      _
    %112 = vsyncpa [#allocation3], 1

// kernel: _actnorm_first_call_impl.3
$region0: #{_actnorm_first_call_impl.3}
  #allocation0 [shape = 'u32[]', space=smem, size = 0x4, offset = 0x4, fixed_abs, tag = 'smem constant byte address 0x4 - core index']
  #allocation1 [shape = 'u32[144,128]{1,0:T(1,128)}', space=vmem, size = 0x12000, scoped, tag = 'internal scratch']
  %s0 = inlined_call_operand.vmem [shape: f32[8,16], index: 0, kind: input, shape index: {}]
  %s1 = inlined_call_operand.vmem [shape: f32[8,2], index: 1, kind: input, shape index: {}]
  %s2 = inlined_call_operand.hbm [shape: f32[8,16], index: 2, kind: output, shape index: {}]
  %s3 = sld [smem:[#allocation0]]
  $region18: #{_actnorm_first_call_impl.3} parent=0
    _
  %s5 = ssub.s32 1, %s3
  %s6 = scalar_select 0, %s5, %s3
  $region1: #{_actnorm_first_call_impl.3} parent=0
    #allocation2 [shape = 'u8[4096]{0}', space=vmem, size = 0x1000, scoped, tag = 'output window, operand 0, single buffered']
    #allocation3 [shape = 's32[1]{0}', space=sflag, size = 0x4, scoped, tag = 'scoped memory for _actnorm_first_call_impl.3']
    %7 = vsyncpa [#allocation3], 0
    // Predicated region
    $region2: #{_actnorm_first_call_impl.3} parent=1 // pred_check
      _
    $region3: #{_actnorm_first_call_impl.3} parent=1 // pred_check_branch
      %9 = sbr.rel (0) target = $region5
    $region4: #{_actnorm_first_call_impl.3} parent=1 // pred_region
      _
    $region5: #{_actnorm_first_call_impl.3} parent=1 // pred_fallthru
      _
    // Predicated region
    $region6: #{_actnorm_first_call_impl.3} parent=1 // pred_check
      _
    $region7: #{_actnorm_first_call_impl.3} parent=1 // pred_check_branch
      %11 = sbr.rel (0) target = $region9
    $region8: #{_actnorm_first_call_impl.3} parent=1 // pred_region
      _
    $region9: #{_actnorm_first_call_impl.3} parent=1 // pred_fallthru
      _
    %v12 = vld [vmem:[%s1] sm:$0xff]
    %v13 = vld [vmem:[%s0] sm:$0xff]
    %15 = vset.pattern.permute.xlu0 0
    %16 = vperm.xlu0 %15, %v12
    %v17 = vpop.permute.xlu0 %16
    %v19 = vadd.f32 %v13, %v17
    %20 = vset.pattern.permute.xlu0 1
    %21 = vperm.xlu0 %20, %v12
    %v22 = vpop.permute.xlu0 %21
    %v24 = vmul.f32 %v19, %v22
    %25 = vst [vmem:[#allocation2] sm:$0xff] %v24
    // Predicated region
    $region10: #{_actnorm_first_call_impl.3} parent=1 // pred_check
      _
    $region11: #{_actnorm_first_call_impl.3} parent=1 // pred_check_branch
      %27 = sbr.rel (0) target = $region13
    $region12: #{_actnorm_first_call_impl.3} parent=1 // pred_region
      %s29 = ssub.s32 128, 128
      %30 = vsyncadd [#allocation3], %s29
      %s32 = sshll.u32 [#allocation2], 4
      %s33 = int_to_ptr.vmem [resolvable:$true] %s32
      %35 = dma.vmem_to_hbm [thread:$0]  %s33, 128, %s2, [#allocation3]
    $region13: #{_actnorm_first_call_impl.3} parent=1 // pred_fallthru
      _
    // Predicated region
    $region14: #{_actnorm_first_call_impl.3} parent=1 // pred_check
      _
    $region15: #{_actnorm_first_call_impl.3} parent=1 // pred_check_branch
      %37 = sbr.rel (0) target = $region17
    $region16: #{_actnorm_first_call_impl.3} parent=1 // pred_region
      %38 = dma.done [#allocation3], 128
    $region17: #{_actnorm_first_call_impl.3} parent=1 // pred_fallthru
      _
    %39 = vsyncpa [#allocation3], 1

</llo_original>
